<compile_context>
chip_gen: v7x
topology: tpu7x:2x2x1
jax: 0.10.0
libtpu: 0.0.40
codegen_flags: <defaults>
</compile_context>

<pallas_src>
import functools

import jax
import jax.numpy as jnp
from jax import lax
from jax.experimental import pallas as pl
from jax.experimental.pallas import tpu as pltpu


def _round_up(x, m):
    return (x + m - 1) // m * m


# --------------------------------------------------------------------------- #
# Kernel
# --------------------------------------------------------------------------- #
def inception_kernel(x_ref, w_ref, b_ref, o_ref, rhs_ref, *,
                     shifts, p0, n_out_p, c_in, c_pad):
    """One grid step: Bt batch elements.

    x_ref  : (Bt, C_in, L)            bf16  zero-padded, spatially flattened input
    w_ref  : (C_out, n_taps*c_pad)    bf16  folded, 1/7-scaled, channel-padded weights
    b_ref  : (C_out, 1)               f32   branch-mean bias
    o_ref  : (Bt, C_out, n_out_p)     bf16  lane-dense flat output (extra lanes dropped
                                            by the wrapper)
    rhs_ref: (n_taps*c_pad, n_out_p)  bf16  stacked-K RHS scratch
    """
    bt = o_ref.shape[0]
    n_taps = len(shifts)

    # Keep the per-tap channel-pad rows at zero.  The matching weight columns are
    # zero, but uninitialized VMEM could hold NaN/Inf (NaN * 0 = NaN), so zero them.
    # Done every grid step (cheap / no-op when c_pad == c_in) so it is correct under
    # megacore grid splitting, where program_id(0)==0 runs on only one core.
    if c_pad > c_in:
        pad_zeros = jnp.zeros((c_pad - c_in, n_out_p), jnp.bfloat16)
        for t in range(n_taps):
            rhs_ref[t * c_pad + c_in:(t + 1) * c_pad, :] = pad_zeros

    bias = b_ref[...]                                       # (C_out, 1) f32

    for b in range(bt):                                     # static unroll over batch tile
        # Build the stacked RHS: one contiguous *static* lane slice per folded tap.
        for t, s in enumerate(shifts):
            start = p0 + s                                  # static python int
            rhs_ref[t * c_pad:t * c_pad + c_in, :] = (
                x_ref[b, :, start:start + n_out_p])         # (C_in, n_out_p)

        # One deep-K MXU matmul (K = n_taps*c_pad), f32 accumulation; no per-tap
        # read-modify-write passes over a VMEM accumulator.
        acc = jnp.dot(w_ref[...], rhs_ref[...],
                      preferred_element_type=jnp.float32)   # (C_out, n_out_p)

        # Fused epilogue: bias add + bf16 cast + lane-dense store.
        o_ref[b] = (acc + bias).astype(o_ref.dtype)


# --------------------------------------------------------------------------- #
# Parameter folding / packing
# --------------------------------------------------------------------------- #
def _conv_names(num_kernels):
    names = []
    for i in range(num_kernels // 2):
        k = 2 * i + 3
        names.append((f"1{k}", k))      # 1 x k conv
        names.append((f"{k}1", k))      # k x 1 conv
    names.append(("11", 1))             # 1 x 1 conv
    return names


def _bias_names(num_kernels):
    return [f"b{s}" for s, _ in _conv_names(num_kernels)]


def _fold_params(params, num_kernels, w_pad, c_pad):
    """Fold same-offset taps across branches; pre-scale by 1/(num_kernels+1).

    Returns (shifts, w_packed):
      shifts  : tuple of flat lane offsets into the padded, flattened input
      w_packed: (C_out, n_taps * c_pad) packed MXU LHS, K order = (tap, channel),
                channel-pad columns are zero.
    """
    n_branches = num_kernels + 1
    halo = num_kernels // 2
    _, c_in, c_out = params["w11"].shape
    zero = jnp.zeros((c_in, c_out), jnp.float32)

    h_taps = {d: zero for d in range(-halo, halo + 1)}
    v_taps = {d: zero for d in range(-halo, halo + 1)}
    for i in range(num_kernels // 2):
        k, p = 2 * i + 3, i + 1
        wh, wv = params[f"w1{k}"], params[f"w{k}1"]
        for t in range(k):
            d = t - p
            h_taps[d] = h_taps[d] + wh[t]
            v_taps[d] = v_taps[d] + wv[t]

    center = h_taps[0] + v_taps[0] + params["w11"][0]

    taps = []
    for d in range(-halo, halo + 1):            # horizontal offsets (dw != 0)
        if d != 0:
            taps.append((d, h_taps[d]))
    for d in range(-halo, halo + 1):            # vertical offsets (dh != 0)
        if d != 0:
            taps.append((d * w_pad, v_taps[d]))
    taps.append((0, center))                    # merged center tap

    shifts = tuple(int(s) for s, _ in taps)

    # Packed LHS (C_out, n_taps*c_pad), pre-scaled by 1/n_branches (branch mean).
    cols = []
    for _, w in taps:
        wt = jnp.transpose(w) / n_branches                      # (C_out, C_in)
        if c_pad > c_in:
            wt = jnp.pad(wt, ((0, 0), (0, c_pad - c_in)))       # zero pad columns
        cols.append(wt)
    w_packed = jnp.concatenate(cols, axis=1)
    return shifts, w_packed


def _pick_batch_tile(B, c_in, c_out, L, n_out_p, k_stack,
                     vmem_budget=20 * 1024 * 1024, max_bt=8):
    """Largest divisor of B that fits a conservative VMEM budget (double-buffered
    I/O + scratch), is <= max_bt, and leaves >= 2 grid steps when B >= 2 (so both
    v7x TensorCores get work).  Budget is sized against v7x's 64 MiB VMEM."""
    def footprint(bt):
        in_buf = 2 * bt * c_in * L * 2                 # bf16 input, double-buffered
        out_buf = 2 * bt * c_out * n_out_p * 2         # bf16 output, double-buffered
        rhs = k_stack * n_out_p * 2                    # stacked-K scratch
        w = 2 * c_out * k_stack * 2                    # weights (double-buffered)
        return in_buf + out_buf + rhs + w + 65536
    best = 1
    for bt in range(1, B + 1):
        if B % bt or bt > max_bt or footprint(bt) > vmem_budget:
            continue
        if B >= 2 and B // bt < 2:
            continue
        best = bt
    return best


# --------------------------------------------------------------------------- #
# Wrapper
# --------------------------------------------------------------------------- #
@functools.partial(jax.jit, static_argnames=("num_kernels",))
def inception_block_v2(x_nchw, params, num_kernels=6):
    """params: w13,w31,w15,w51,w17,w71 (K,C_in,C_out), w11 (1,C_in,C_out) and
    per-branch biases b13,...,b11 (C_out,).  Output matches the PyTorch module:
    mean over the num_kernels+1 branch outputs (each conv has its own bias)."""
    assert num_kernels % 2 == 0, "Inception_Block_V2 requires even num_kernels"
    B, C_in, H, W = x_nchw.shape
    C_out = params["w11"].shape[-1]
    halo = num_kernels // 2
    c_pad = _round_up(C_in, 8)                 # sublane-aligned per-tap RHS blocks

    w_pad = W + 2 * halo
    n_out = H * w_pad                          # flat output length (padded width kept)
    n_out_p = _round_up(n_out, 128)            # lane-dense matmul N / output stores
    pad_lanes = n_out_p - n_out
    # Extra bottom rows so every shifted read (max shift +halo*w_pad) of n_out_p
    # lanes stays in bounds: extra_rows*w_pad >= halo + pad_lanes.
    extra_rows = -(-(halo + pad_lanes) // w_pad)
    h_pad = H + 2 * halo + extra_rows
    L = h_pad * w_pad                          # flat padded input length per channel
    p0 = halo * w_pad + halo                   # flat index of output pixel (0, 0)

    shifts, w_packed = _fold_params(params, num_kernels, w_pad, c_pad)
    n_taps = len(shifts)
    k_stack = n_taps * c_pad

    # Branch-mean bias (mean of per-conv biases == bias of the branch mean).
    bias_mean = sum(params[n] for n in _bias_names(num_kernels)) / (num_kernels + 1)
    bias2d = bias_mean.reshape(C_out, 1).astype(jnp.float32)

    # Pad spatially in NCHW (no transpose), flatten H_pad*W_pad, cast to bf16.
    x_p = jnp.pad(x_nchw, ((0, 0), (0, 0), (halo, halo + extra_rows), (halo, halo)))
    x_flat = x_p.reshape(B, C_in, L).astype(jnp.bfloat16)
    w_bf16 = w_packed.astype(jnp.bfloat16)

    Bt = _pick_batch_tile(B, C_in, C_out, L, n_out_p, k_stack)

    kernel = functools.partial(
        inception_kernel, shifts=shifts, p0=p0, n_out_p=n_out_p,
        c_in=C_in, c_pad=c_pad)

    out_flat = pl.pallas_call(
        kernel,
        out_shape=jax.ShapeDtypeStruct((B, C_out, n_out_p), jnp.bfloat16),
        grid_spec=pltpu.PrefetchScalarGridSpec(
            num_scalar_prefetch=0,
            grid=(B // Bt,),
            in_specs=[
                pl.BlockSpec((Bt, C_in, L), lambda g: (g, 0, 0)),          # x
                pl.BlockSpec((C_out, k_stack), lambda g: (0, 0)),          # weights
                pl.BlockSpec((C_out, 1), lambda g: (0, 0)),                # bias
            ],
            out_specs=pl.BlockSpec((Bt, C_out, n_out_p), lambda g: (g, 0, 0)),
            scratch_shapes=[pltpu.VMEM((k_stack, n_out_p), jnp.bfloat16)],
        ),
        compiler_params=pltpu.CompilerParams(
            dimension_semantics=("parallel",),
            vmem_limit_bytes=32 * 1024 * 1024,
        ),
    )(x_flat, w_bf16, bias2d)

    # (B, C_out, n_out_p) -> drop lane padding -> (B, C_out, H, w_pad) -> drop
    # padded-width tail -> cast back to the caller's dtype.
    out = out_flat[:, :, :n_out].reshape(B, C_out, H, w_pad)[:, :, :, :W]
    return out.astype(x_nchw.dtype)


# --------------------------------------------------------------------------- #
# Parameter init (matches the PyTorch module's kaiming_normal fan_out init;
# biases are zero at init, but the kernel supports arbitrary per-branch biases)
# --------------------------------------------------------------------------- #
def init_params(key, in_channels, out_channels, num_kernels=6):
    names = _conv_names(num_kernels)
    params = {}
    keys = jax.random.split(key, len(names))
    for (suffix, k), kk in zip(names, keys):
        fan_out = out_channels * k      # kH*kW == k for every branch here
        std = (2.0 / fan_out) ** 0.5
        params[f"w{suffix}"] = std * jax.random.normal(
            kk, (k, in_channels, out_channels), jnp.float32)
        params[f"b{suffix}"] = jnp.zeros((out_channels,), jnp.float32)
    return params


# --------------------------------------------------------------------------- #
# Pure-JAX reference (f32, lax.conv, per-branch biases)
# --------------------------------------------------------------------------- #
def reference_forward(x_nchw, params, num_kernels=6):
    x = jnp.transpose(x_nchw, (0, 2, 3, 1))
    outs = []
    for i in range(num_kernels // 2):
        k, p = 2 * i + 3, i + 1
        w = params[f"w1{k}"][None]                      # (1, k, C_in, C_out)
        o = lax.conv_general_dilated(
            x, w, (1, 1), [(0, 0), (p, p)],
            dimension_numbers=("NHWC", "HWIO", "NHWC"))
        outs.append(o + params[f"b1{k}"])
        w = params[f"w{k}1"][:, None]                   # (k, 1, C_in, C_out)
        o = lax.conv_general_dilated(
            x, w, (1, 1), [(p, p), (0, 0)],
            dimension_numbers=("NHWC", "HWIO", "NHWC"))
        outs.append(o + params[f"b{k}1"])
    w = params["w11"][None]                             # 1x1
    o = lax.conv_general_dilated(
        x, w, (1, 1), [(0, 0), (0, 0)],
        dimension_numbers=("NHWC", "HWIO", "NHWC"))
    outs.append(o + params["b11"])
    res = jnp.stack(outs, axis=-1).mean(-1)
    return jnp.transpose(res, (0, 3, 1, 2))


if __name__ == "__main__":
    B, C_in, C_out, H, W = 2, 4, 8, 16, 16
    num_kernels = 6
    key = jax.random.PRNGKey(0)
    kx, kp, kb = jax.random.split(key, 3)
    x = jax.random.normal(kx, (B, C_in, H, W), jnp.float32)
    params = init_params(kp, C_in, C_out, num_kernels=num_kernels)

    # Exercise the non-zero-bias path (PyTorch init is zero, a trained model is
    # not): the kernel folds the branch-mean bias, the reference adds each
    # branch's own bias — they must still agree.
    bnames = _bias_names(num_kernels)
    for name, bk in zip(bnames, jax.random.split(kb, len(bnames))):
        params[name] = 0.1 * jax.random.normal(bk, (C_out,), jnp.float32)

    out = jax.block_until_ready(
        inception_block_v2(x, params, num_kernels=num_kernels))
    ref = jax.block_until_ready(reference_forward(x, params, num_kernels))

    assert out.shape == (B, C_out, H, W), out.shape
    # bf16 inputs/weights/output with f32 accumulation -> relaxed tolerance vs f32.
    err = float(jnp.max(jnp.abs(out - ref)))
    assert jnp.allclose(out, ref, atol=3e-2, rtol=3e-2), err
    print("KERNEL_OK")
</pallas_src>

<mosaic_0001>
module attributes {stable_mosaic.version = 11 : i64} {
  func.func @inception_kernel(%arg0: i32, %arg1: memref<1x4x528xbf16, #tpu.memory_space<vmem>>, %arg2: memref<8x104xbf16, #tpu.memory_space<vmem>>, %arg3: memref<8x1xf32, #tpu.memory_space<vmem>>, %arg4: memref<1x8x384xbf16, #tpu.memory_space<vmem>>, %arg5: memref<104x384xbf16, #tpu.memory_space<vmem>>) attributes {dimension_semantics = [#tpu.dimension_semantics<parallel>], iteration_bounds = array<i64: 2>, scalar_prefetch = 0 : i64, scratch_operands = 1 : i64, tpu.core_type = #tpu.core_type<tc>, window_params = [{transform_indices = @transform_0, window_bounds = array<i64: 1, 4, 528>}, {pipeline_mode = #tpu.pipeline_mode<synchronous>, transform_indices = @transform_1, window_bounds = array<i64: 8, 104>}, {pipeline_mode = #tpu.pipeline_mode<synchronous>, transform_indices = @transform_2, window_bounds = array<i64: 8, 1>}, {transform_indices = @transform_3, window_bounds = array<i64: 1, 8, 384>}]} {
    %cst = arith.constant 0.000000e+00 : bf16
    %0 = vector.broadcast %cst : bf16 to vector<4x384xbf16>
    %c4 = arith.constant 4 : index
    %c0 = arith.constant 0 : index
    %1 = vector.load %arg5[%c4, %c0] : memref<104x384xbf16, #tpu.memory_space<vmem>>, vector<4x384xbf16>
    tpu.vector_store %arg5[%c4, %c0], %0 {strides = array<i32>} : memref<104x384xbf16, #tpu.memory_space<vmem>>, vector<4x384xbf16>,
    %c12 = arith.constant 12 : index
    %c0_0 = arith.constant 0 : index
    %2 = vector.load %arg5[%c12, %c0_0] : memref<104x384xbf16, #tpu.memory_space<vmem>>, vector<4x384xbf16>
    tpu.vector_store %arg5[%c12, %c0_0], %0 {strides = array<i32>} : memref<104x384xbf16, #tpu.memory_space<vmem>>, vector<4x384xbf16>,
    %c20 = arith.constant 20 : index
    %c0_1 = arith.constant 0 : index
    %3 = vector.load %arg5[%c20, %c0_1] : memref<104x384xbf16, #tpu.memory_space<vmem>>, vector<4x384xbf16>
    tpu.vector_store %arg5[%c20, %c0_1], %0 {strides = array<i32>} : memref<104x384xbf16, #tpu.memory_space<vmem>>, vector<4x384xbf16>,
    %c28 = arith.constant 28 : index
    %c0_2 = arith.constant 0 : index
    %4 = vector.load %arg5[%c28, %c0_2] : memref<104x384xbf16, #tpu.memory_space<vmem>>, vector<4x384xbf16>
    tpu.vector_store %arg5[%c28, %c0_2], %0 {strides = array<i32>} : memref<104x384xbf16, #tpu.memory_space<vmem>>, vector<4x384xbf16>,
    %c36 = arith.constant 36 : index
    %c0_3 = arith.constant 0 : index
    %5 = vector.load %arg5[%c36, %c0_3] : memref<104x384xbf16, #tpu.memory_space<vmem>>, vector<4x384xbf16>
    tpu.vector_store %arg5[%c36, %c0_3], %0 {strides = array<i32>} : memref<104x384xbf16, #tpu.memory_space<vmem>>, vector<4x384xbf16>,
    %c44 = arith.constant 44 : index
    %c0_4 = arith.constant 0 : index
    %6 = vector.load %arg5[%c44, %c0_4] : memref<104x384xbf16, #tpu.memory_space<vmem>>, vector<4x384xbf16>
    tpu.vector_store %arg5[%c44, %c0_4], %0 {strides = array<i32>} : memref<104x384xbf16, #tpu.memory_space<vmem>>, vector<4x384xbf16>,
    %c52 = arith.constant 52 : index
    %c0_5 = arith.constant 0 : index
    %7 = vector.load %arg5[%c52, %c0_5] : memref<104x384xbf16, #tpu.memory_space<vmem>>, vector<4x384xbf16>
    tpu.vector_store %arg5[%c52, %c0_5], %0 {strides = array<i32>} : memref<104x384xbf16, #tpu.memory_space<vmem>>, vector<4x384xbf16>,
    %c60 = arith.constant 60 : index
    %c0_6 = arith.constant 0 : index
    %8 = vector.load %arg5[%c60, %c0_6] : memref<104x384xbf16, #tpu.memory_space<vmem>>, vector<4x384xbf16>
    tpu.vector_store %arg5[%c60, %c0_6], %0 {strides = array<i32>} : memref<104x384xbf16, #tpu.memory_space<vmem>>, vector<4x384xbf16>,
    %c68 = arith.constant 68 : index
    %c0_7 = arith.constant 0 : index
    %9 = vector.load %arg5[%c68, %c0_7] : memref<104x384xbf16, #tpu.memory_space<vmem>>, vector<4x384xbf16>
    tpu.vector_store %arg5[%c68, %c0_7], %0 {strides = array<i32>} : memref<104x384xbf16, #tpu.memory_space<vmem>>, vector<4x384xbf16>,
    %c76 = arith.constant 76 : index
    %c0_8 = arith.constant 0 : index
    %10 = vector.load %arg5[%c76, %c0_8] : memref<104x384xbf16, #tpu.memory_space<vmem>>, vector<4x384xbf16>
    tpu.vector_store %arg5[%c76, %c0_8], %0 {strides = array<i32>} : memref<104x384xbf16, #tpu.memory_space<vmem>>, vector<4x384xbf16>,
    %c84 = arith.constant 84 : index
    %c0_9 = arith.constant 0 : index
    %11 = vector.load %arg5[%c84, %c0_9] : memref<104x384xbf16, #tpu.memory_space<vmem>>, vector<4x384xbf16>
    tpu.vector_store %arg5[%c84, %c0_9], %0 {strides = array<i32>} : memref<104x384xbf16, #tpu.memory_space<vmem>>, vector<4x384xbf16>,
    %c92 = arith.constant 92 : index
    %c0_10 = arith.constant 0 : index
    %12 = vector.load %arg5[%c92, %c0_10] : memref<104x384xbf16, #tpu.memory_space<vmem>>, vector<4x384xbf16>
    tpu.vector_store %arg5[%c92, %c0_10], %0 {strides = array<i32>} : memref<104x384xbf16, #tpu.memory_space<vmem>>, vector<4x384xbf16>,
    %c100 = arith.constant 100 : index
    %c0_11 = arith.constant 0 : index
    %13 = vector.load %arg5[%c100, %c0_11] : memref<104x384xbf16, #tpu.memory_space<vmem>>, vector<4x384xbf16>
    tpu.vector_store %arg5[%c100, %c0_11], %0 {strides = array<i32>} : memref<104x384xbf16, #tpu.memory_space<vmem>>, vector<4x384xbf16>,
    %c0_12 = arith.constant 0 : index
    %c0_13 = arith.constant 0 : index
    %14 = vector.load %arg3[%c0_12, %c0_13] : memref<8x1xf32, #tpu.memory_space<vmem>>, vector<8x1xf32>
    %c0_14 = arith.constant 0 : index
    %c0_15 = arith.constant 0 : index
    %c66 = arith.constant 66 : index
    %15 = vector.load %arg1[%c0_14, %c0_15, %c66] : memref<1x4x528xbf16, #tpu.memory_space<vmem>>, vector<1x4x384xbf16>
    %16 = vector.shape_cast %15 : vector<1x4x384xbf16> to vector<4x384xbf16>
    %c0_16 = arith.constant 0 : index
    %c0_17 = arith.constant 0 : index
    %17 = vector.load %arg5[%c0_16, %c0_17] : memref<104x384xbf16, #tpu.memory_space<vmem>>, vector<4x384xbf16>
    tpu.vector_store %arg5[%c0_16, %c0_17], %16 {strides = array<i32>} : memref<104x384xbf16, #tpu.memory_space<vmem>>, vector<4x384xbf16>,
    %c0_18 = arith.constant 0 : index
    %c0_19 = arith.constant 0 : index
    %c67 = arith.constant 67 : index
    %18 = vector.load %arg1[%c0_18, %c0_19, %c67] : memref<1x4x528xbf16, #tpu.memory_space<vmem>>, vector<1x4x384xbf16>
    %19 = vector.shape_cast %18 : vector<1x4x384xbf16> to vector<4x384xbf16>
    %c8 = arith.constant 8 : index
    %c0_20 = arith.constant 0 : index
    %20 = vector.load %arg5[%c8, %c0_20] : memref<104x384xbf16, #tpu.memory_space<vmem>>, vector<4x384xbf16>
    tpu.vector_store %arg5[%c8, %c0_20], %19 {strides = array<i32>} : memref<104x384xbf16, #tpu.memory_space<vmem>>, vector<4x384xbf16>,
    %c0_21 = arith.constant 0 : index
    %c0_22 = arith.constant 0 : index
    %c68_23 = arith.constant 68 : index
    %21 = vector.load %arg1[%c0_21, %c0_22, %c68_23] : memref<1x4x528xbf16, #tpu.memory_space<vmem>>, vector<1x4x384xbf16>
    %22 = vector.shape_cast %21 : vector<1x4x384xbf16> to vector<4x384xbf16>
    %c16 = arith.constant 16 : index
    %c0_24 = arith.constant 0 : index
    %23 = vector.load %arg5[%c16, %c0_24] : memref<104x384xbf16, #tpu.memory_space<vmem>>, vector<4x384xbf16>
    tpu.vector_store %arg5[%c16, %c0_24], %22 {strides = array<i32>} : memref<104x384xbf16, #tpu.memory_space<vmem>>, vector<4x384xbf16>,
    %c0_25 = arith.constant 0 : index
    %c0_26 = arith.constant 0 : index
    %c70 = arith.constant 70 : index
    %24 = vector.load %arg1[%c0_25, %c0_26, %c70] : memref<1x4x528xbf16, #tpu.memory_space<vmem>>, vector<1x4x384xbf16>
    %25 = vector.shape_cast %24 : vector<1x4x384xbf16> to vector<4x384xbf16>
    %c24 = arith.constant 24 : index
    %c0_27 = arith.constant 0 : index
    %26 = vector.load %arg5[%c24, %c0_27] : memref<104x384xbf16, #tpu.memory_space<vmem>>, vector<4x384xbf16>
    tpu.vector_store %arg5[%c24, %c0_27], %25 {strides = array<i32>} : memref<104x384xbf16, #tpu.memory_space<vmem>>, vector<4x384xbf16>,
    %c0_28 = arith.constant 0 : index
    %c0_29 = arith.constant 0 : index
    %c71 = arith.constant 71 : index
    %27 = vector.load %arg1[%c0_28, %c0_29, %c71] : memref<1x4x528xbf16, #tpu.memory_space<vmem>>, vector<1x4x384xbf16>
    %28 = vector.shape_cast %27 : vector<1x4x384xbf16> to vector<4x384xbf16>
    %c32 = arith.constant 32 : index
    %c0_30 = arith.constant 0 : index
    %29 = vector.load %arg5[%c32, %c0_30] : memref<104x384xbf16, #tpu.memory_space<vmem>>, vector<4x384xbf16>
    tpu.vector_store %arg5[%c32, %c0_30], %28 {strides = array<i32>} : memref<104x384xbf16, #tpu.memory_space<vmem>>, vector<4x384xbf16>,
    %c0_31 = arith.constant 0 : index
    %c0_32 = arith.constant 0 : index
    %c72 = arith.constant 72 : index
    %30 = vector.load %arg1[%c0_31, %c0_32, %c72] : memref<1x4x528xbf16, #tpu.memory_space<vmem>>, vector<1x4x384xbf16>
    %31 = vector.shape_cast %30 : vector<1x4x384xbf16> to vector<4x384xbf16>
    %c40 = arith.constant 40 : index
    %c0_33 = arith.constant 0 : index
    %32 = vector.load %arg5[%c40, %c0_33] : memref<104x384xbf16, #tpu.memory_space<vmem>>, vector<4x384xbf16>
    tpu.vector_store %arg5[%c40, %c0_33], %31 {strides = array<i32>} : memref<104x384xbf16, #tpu.memory_space<vmem>>, vector<4x384xbf16>,
    %c0_34 = arith.constant 0 : index
    %c0_35 = arith.constant 0 : index
    %c3 = arith.constant 3 : index
    %33 = vector.load %arg1[%c0_34, %c0_35, %c3] : memref<1x4x528xbf16, #tpu.memory_space<vmem>>, vector<1x4x384xbf16>
    %34 = vector.shape_cast %33 : vector<1x4x384xbf16> to vector<4x384xbf16>
    %c48 = arith.constant 48 : index
    %c0_36 = arith.constant 0 : index
    %35 = vector.load %arg5[%c48, %c0_36] : memref<104x384xbf16, #tpu.memory_space<vmem>>, vector<4x384xbf16>
    tpu.vector_store %arg5[%c48, %c0_36], %34 {strides = array<i32>} : memref<104x384xbf16, #tpu.memory_space<vmem>>, vector<4x384xbf16>,
    %c0_37 = arith.constant 0 : index
    %c0_38 = arith.constant 0 : index
    %c25 = arith.constant 25 : index
    %36 = vector.load %arg1[%c0_37, %c0_38, %c25] : memref<1x4x528xbf16, #tpu.memory_space<vmem>>, vector<1x4x384xbf16>
    %37 = vector.shape_cast %36 : vector<1x4x384xbf16> to vector<4x384xbf16>
    %c56 = arith.constant 56 : index
    %c0_39 = arith.constant 0 : index
    %38 = vector.load %arg5[%c56, %c0_39] : memref<104x384xbf16, #tpu.memory_space<vmem>>, vector<4x384xbf16>
    tpu.vector_store %arg5[%c56, %c0_39], %37 {strides = array<i32>} : memref<104x384xbf16, #tpu.memory_space<vmem>>, vector<4x384xbf16>,
    %c0_40 = arith.constant 0 : index
    %c0_41 = arith.constant 0 : index
    %c47 = arith.constant 47 : index
    %39 = vector.load %arg1[%c0_40, %c0_41, %c47] : memref<1x4x528xbf16, #tpu.memory_space<vmem>>, vector<1x4x384xbf16>
    %40 = vector.shape_cast %39 : vector<1x4x384xbf16> to vector<4x384xbf16>
    %c64 = arith.constant 64 : index
    %c0_42 = arith.constant 0 : index
    %41 = vector.load %arg5[%c64, %c0_42] : memref<104x384xbf16, #tpu.memory_space<vmem>>, vector<4x384xbf16>
    tpu.vector_store %arg5[%c64, %c0_42], %40 {strides = array<i32>} : memref<104x384xbf16, #tpu.memory_space<vmem>>, vector<4x384xbf16>,
    %c0_43 = arith.constant 0 : index
    %c0_44 = arith.constant 0 : index
    %c91 = arith.constant 91 : index
    %42 = vector.load %arg1[%c0_43, %c0_44, %c91] : memref<1x4x528xbf16, #tpu.memory_space<vmem>>, vector<1x4x384xbf16>
    %43 = vector.shape_cast %42 : vector<1x4x384xbf16> to vector<4x384xbf16>
    %c72_45 = arith.constant 72 : index
    %c0_46 = arith.constant 0 : index
    %44 = vector.load %arg5[%c72_45, %c0_46] : memref<104x384xbf16, #tpu.memory_space<vmem>>, vector<4x384xbf16>
    tpu.vector_store %arg5[%c72_45, %c0_46], %43 {strides = array<i32>} : memref<104x384xbf16, #tpu.memory_space<vmem>>, vector<4x384xbf16>,
    %c0_47 = arith.constant 0 : index
    %c0_48 = arith.constant 0 : index
    %c113 = arith.constant 113 : index
    %45 = vector.load %arg1[%c0_47, %c0_48, %c113] : memref<1x4x528xbf16, #tpu.memory_space<vmem>>, vector<1x4x384xbf16>
    %46 = vector.shape_cast %45 : vector<1x4x384xbf16> to vector<4x384xbf16>
    %c80 = arith.constant 80 : index
    %c0_49 = arith.constant 0 : index
    %47 = vector.load %arg5[%c80, %c0_49] : memref<104x384xbf16, #tpu.memory_space<vmem>>, vector<4x384xbf16>
    tpu.vector_store %arg5[%c80, %c0_49], %46 {strides = array<i32>} : memref<104x384xbf16, #tpu.memory_space<vmem>>, vector<4x384xbf16>,
    %c0_50 = arith.constant 0 : index
    %c0_51 = arith.constant 0 : index
    %c135 = arith.constant 135 : index
    %48 = vector.load %arg1[%c0_50, %c0_51, %c135] : memref<1x4x528xbf16, #tpu.memory_space<vmem>>, vector<1x4x384xbf16>
    %49 = vector.shape_cast %48 : vector<1x4x384xbf16> to vector<4x384xbf16>
    %c88 = arith.constant 88 : index
    %c0_52 = arith.constant 0 : index
    %50 = vector.load %arg5[%c88, %c0_52] : memref<104x384xbf16, #tpu.memory_space<vmem>>, vector<4x384xbf16>
    tpu.vector_store %arg5[%c88, %c0_52], %49 {strides = array<i32>} : memref<104x384xbf16, #tpu.memory_space<vmem>>, vector<4x384xbf16>,
    %c0_53 = arith.constant 0 : index
    %c0_54 = arith.constant 0 : index
    %c69 = arith.constant 69 : index
    %51 = vector.load %arg1[%c0_53, %c0_54, %c69] : memref<1x4x528xbf16, #tpu.memory_space<vmem>>, vector<1x4x384xbf16>
    %52 = vector.shape_cast %51 : vector<1x4x384xbf16> to vector<4x384xbf16>
    %c96 = arith.constant 96 : index
    %c0_55 = arith.constant 0 : index
    %53 = vector.load %arg5[%c96, %c0_55] : memref<104x384xbf16, #tpu.memory_space<vmem>>, vector<4x384xbf16>
    tpu.vector_store %arg5[%c96, %c0_55], %52 {strides = array<i32>} : memref<104x384xbf16, #tpu.memory_space<vmem>>, vector<4x384xbf16>,
    %c0_56 = arith.constant 0 : index
    %c0_57 = arith.constant 0 : index
    %54 = vector.load %arg2[%c0_56, %c0_57] : memref<8x104xbf16, #tpu.memory_space<vmem>>, vector<8x104xbf16>
    %c0_58 = arith.constant 0 : index
    %c0_59 = arith.constant 0 : index
    %55 = vector.load %arg5[%c0_58, %c0_59] : memref<104x384xbf16, #tpu.memory_space<vmem>>, vector<104x384xbf16>
    %cst_60 = arith.constant dense<0.000000e+00> : vector<8x384xf32>
    %56 = tpu.matmul %54, %55, %cst_60 {dimension_numbers = #tpu.dot_dimension_numbers<[1], [0], [0], [1], [0, 0, 1, 1], [], []>} : vector<8x104xbf16>, vector<104x384xbf16>, vector<8x384xf32> -> vector<8x384xf32>
    %57 = vector.broadcast %14 : vector<8x1xf32> to vector<8x384xf32>
    %58 = arith.addf %56, %57 : vector<8x384xf32>
    %59 = arith.truncf %58 : vector<8x384xf32> to vector<8x384xbf16>
    %c0_61 = arith.constant 0 : index
    %c0_62 = arith.constant 0 : index
    %c0_63 = arith.constant 0 : index
    %60 = vector.load %arg4[%c0_61, %c0_62, %c0_63] : memref<1x8x384xbf16, #tpu.memory_space<vmem>>, vector<1x8x384xbf16>
    %61 = vector.shape_cast %60 : vector<1x8x384xbf16> to vector<8x384xbf16>
    %62 = vector.shape_cast %59 : vector<8x384xbf16> to vector<1x8x384xbf16>
    tpu.vector_store %arg4[%c0_61, %c0_62, %c0_63], %62 {strides = array<i32>} : memref<1x8x384xbf16, #tpu.memory_space<vmem>>, vector<1x8x384xbf16>,
    return
  }
  func.func @transform_0(%arg0: i32) -> (i32, i32, i32) {
    %c0_i32 = arith.constant 0 : i32
    %c0_i32_0 = arith.constant 0 : i32
    %c0_i32_1 = arith.constant 0 : i32
    return %arg0, %c0_i32, %c0_i32_0 : i32, i32, i32
  }
  func.func @transform_1(%arg0: i32) -> (i32, i32) {
    %c0_i32 = arith.constant 0 : i32
    %c0_i32_0 = arith.constant 0 : i32
    %c0_i32_1 = arith.constant 0 : i32
    return %c0_i32, %c0_i32_0 : i32, i32
  }
  func.func @transform_2(%arg0: i32) -> (i32, i32) {
    %c0_i32 = arith.constant 0 : i32
    %c0_i32_0 = arith.constant 0 : i32
    %c0_i32_1 = arith.constant 0 : i32
    return %c0_i32, %c0_i32_0 : i32, i32
  }
  func.func @transform_3(%arg0: i32) -> (i32, i32, i32) {
    %c0_i32 = arith.constant 0 : i32
    %c0_i32_0 = arith.constant 0 : i32
    %c0_i32_1 = arith.constant 0 : i32
    return %arg0, %c0_i32, %c0_i32_0 : i32, i32, i32
  }
}

</mosaic_0001>

<llo_original>
// kernel: inception_block_v2.1
$region0: #{inception_block_v2.1}
  #allocation0 [shape = 'u32[]', space=smem, size = 0x4, offset = 0x4, fixed_abs, tag = 'smem constant byte address 0x4 - core index']
  #allocation1 [shape = 'u32[144,128]{1,0:T(1,128)}', space=vmem, size = 0x12000, scoped, tag = 'internal scratch']
  #allocation2 [shape = 'bf16[104,384]{1,0:T(8,128)(2,1)}', space=vmem, size = 0x13800, scoped, tag = 'scratch operand']
  %s0 = inlined_call_operand.vmem [shape: bf16[2,4,528], index: 0, kind: input, shape index: {}]
  %s1 = inlined_call_operand.vmem [shape: bf16[8,104], index: 1, kind: input, shape index: {}]
  %s2 = inlined_call_operand.vmem [shape: f32[8,1], index: 2, kind: input, shape index: {}]
  %s3 = inlined_call_operand.vmem [shape: bf16[2,8,384], index: 3, kind: output, shape index: {}]
  %s4 = sld [smem:[#allocation0]]
  $region45: #{inception_block_v2.1} parent=0
    _
  %s6 = ssub.s32 1, %s4
  %s7 = scalar_select 0, %s6, %s4
  loop: start=0, step=1, limit=4
  $region2: #{inception_block_v2.1} parent=0 // loop_pre_header
    _
  $region3: #{inception_block_v2.1} parent=0 // loop_header
    %s9 = sphi 0, %s13
    %p10 = scmp.ge.s32.totalorder %s9, 4
    %s19 = sphi 0, %s21
    %s22 = sphi 0, %s19
    %s23 = sphi 0, %s22
    %s39 = sphi 0, %s23
    %s43 = sphi 0, %s43
    %s45 = sphi 0, %s43
    %s46 = sphi 0, %s45
    %s60 = sphi 0, %s46
    %s64 = sphi 0, %s64
    %s66 = sphi 0, %s64
    %s67 = sphi 0, %s66
    %s81 = sphi 0, %s67
    %s87 = sphi 0, %s89
    %s90 = sphi 0, %s87
    %s91 = sphi 0, %s90
    %s107 = sphi 0, %s91
  $region4: #{inception_block_v2.1} parent=0 // loop_header_branch
    %12 = sbr.rel (%p10) target = $region8
  $region5: #{inception_block_v2.1} parent=0 // loop_body
    %s14 = ssub.s32 %s9, 1
    %s15 = ssub.s32 %s9, 2
    %s16 = sadd.s32 %s9, 1
    %s17 = ssub.s32 %s9, %s16
    %p18 = scmp.eq.s32.totalorder %s17, 0
    %s20 = sadd.s32 %s19, 1
    %s21 = scalar_select %p18, %s19, %s20
    %p24 = pneg %p18
    %p25 = scmp.eq.s32.totalorder %s9, 1
    %p26 = por %p24, %p25
    %p27 = scmp.ne.s32.totalorder %s19, %s22
    %p28 = scmp.eq.s32.totalorder %s9, 0
    %p29 = por %p27, %p28
    %p30 = scmp.ne.s32.totalorder %s19, %s22
    %p31 = scmp.eq.s32.totalorder %s14, 1
    %p32 = por %p30, %p31
    %p33 = scmp.ne.s32.totalorder %s22, %s23
    %p34 = scmp.eq.s32.totalorder %s14, 0
    %p35 = por %p33, %p34
    %p36 = scmp.ne.s32.totalorder %s22, %s23
    %p37 = scmp.eq.s32.totalorder %s15, 1
    %p38 = por %p36, %p37
    %p40 = scmp.ne.s32.totalorder %s23, %s39
    %p41 = scmp.eq.s32.totalorder %s15, 0
    %p42 = por %p40, %p41
    %s44 = sadd.s32 %s43, 1
    %p47 = scmp.eq.s32.totalorder %s9, 1
    %p48 = scmp.ne.s32.totalorder %s43, %s45
    %p49 = scmp.eq.s32.totalorder %s9, 0
    %p50 = por %p48, %p49
    %p51 = scmp.ne.s32.totalorder %s43, %s45
    %p52 = scmp.eq.s32.totalorder %s14, 1
    %p53 = por %p51, %p52
    %p54 = scmp.ne.s32.totalorder %s45, %s46
    %p55 = scmp.eq.s32.totalorder %s14, 0
    %p56 = por %p54, %p55
    %p57 = scmp.ne.s32.totalorder %s45, %s46
    %p58 = scmp.eq.s32.totalorder %s15, 1
    %p59 = por %p57, %p58
    %p61 = scmp.ne.s32.totalorder %s46, %s60
    %p62 = scmp.eq.s32.totalorder %s15, 0
    %p63 = por %p61, %p62
    %s65 = sadd.s32 %s64, 1
    %p68 = scmp.eq.s32.totalorder %s9, 1
    %p69 = scmp.ne.s32.totalorder %s64, %s66
    %p70 = scmp.eq.s32.totalorder %s9, 0
    %p71 = por %p69, %p70
    %p72 = scmp.ne.s32.totalorder %s64, %s66
    %p73 = scmp.eq.s32.totalorder %s14, 1
    %p74 = por %p72, %p73
    %p75 = scmp.ne.s32.totalorder %s66, %s67
    %p76 = scmp.eq.s32.totalorder %s14, 0
    %p77 = por %p75, %p76
    %p78 = scmp.ne.s32.totalorder %s66, %s67
    %p79 = scmp.eq.s32.totalorder %s15, 1
    %p80 = por %p78, %p79
    %p82 = scmp.ne.s32.totalorder %s67, %s81
    %p83 = scmp.eq.s32.totalorder %s15, 0
    %p84 = por %p82, %p83
    %s85 = ssub.s32 %s9, %s16
    %p86 = scmp.eq.s32.totalorder %s85, 0
    %s88 = sadd.s32 %s87, 1
    %s89 = scalar_select %p86, %s87, %s88
    %p92 = pneg %p86
    %p93 = scmp.eq.s32.totalorder %s9, 1
    %p94 = por %p92, %p93
    %p95 = scmp.ne.s32.totalorder %s87, %s90
    %p96 = scmp.eq.s32.totalorder %s9, 0
    %p97 = por %p95, %p96
    %p98 = scmp.ne.s32.totalorder %s87, %s90
    %p99 = scmp.eq.s32.totalorder %s14, 1
    %p100 = por %p98, %p99
    %p101 = scmp.ne.s32.totalorder %s90, %s91
    %p102 = scmp.eq.s32.totalorder %s14, 0
    %p103 = por %p101, %p102
    %p104 = scmp.ne.s32.totalorder %s90, %s91
    %p105 = scmp.eq.s32.totalorder %s15, 1
    %p106 = por %p104, %p105
    %p108 = scmp.ne.s32.totalorder %s91, %s107
    %p109 = scmp.eq.s32.totalorder %s15, 0
    %p110 = por %p108, %p109
    %p111 = scmp.le.s32.totalorder 1, %s9
    %p112 = scmp.lt.s32.totalorder %s9, 3
    %p113 = pnand %p111, %p112
    %p114 = pneg %p113
    // Predicated region
    $region9: #{inception_block_v2.1} parent=5 // pred_check
      _
    $region10: #{inception_block_v2.1} parent=5 // pred_check_branch
      %116 = sbr.rel (%p113) target = $region12
    $region11: #{inception_block_v2.1} parent=5 // pred_region
      %s117 = ssub.s32 %s9, 1
      // Predicated region
      $region13: #{inception_block_v2.1} parent=11 // pred_check
        %p118 = pneg %p56
      $region14: #{inception_block_v2.1} parent=11 // pred_check_branch
        %120 = sbr.rel (%p118) target = $region16
      $region15: #{inception_block_v2.1} parent=11 // pred_region
        _
      $region16: #{inception_block_v2.1} parent=11 // pred_fallthru
        _
      // Predicated region
      $region17: #{inception_block_v2.1} parent=11 // pred_check
        %p121 = pneg %p77
      $region18: #{inception_block_v2.1} parent=11 // pred_check_branch
        %123 = sbr.rel (%p121) target = $region20
      $region19: #{inception_block_v2.1} parent=11 // pred_region
        _
      $region20: #{inception_block_v2.1} parent=11 // pred_fallthru
        _
    $region12: #{inception_block_v2.1} parent=5 // pred_fallthru
      _
    %p124 = scmp.lt.s32.totalorder %s9, 2
    // Predicated region
    $region21: #{inception_block_v2.1} parent=5 // pred_check
      %p125 = pneg %p124
    $region22: #{inception_block_v2.1} parent=5 // pred_check_branch
      %127 = sbr.rel (%p125) target = $region24
    $region23: #{inception_block_v2.1} parent=5 // pred_region
      // Predicated region
      $region25: #{inception_block_v2.1} parent=23 // pred_check
        %p128 = pneg %p29
      $region26: #{inception_block_v2.1} parent=23 // pred_check_branch
        %130 = sbr.rel (%p128) target = $region28
      $region27: #{inception_block_v2.1} parent=23 // pred_region
        %p131 = scmp.lt.s32.totalorder %s9, 1
        %s132 = scalar_select %p131, %s9, 1
        %s133 = smul.addr %s132, 5
        %s134 = smul.addr %s133, 2
        %s135 = scalar_lea.vmem %s0, %s134
      $region28: #{inception_block_v2.1} parent=23 // pred_fallthru
        _
    $region24: #{inception_block_v2.1} parent=5 // pred_fallthru
      _
    %p136 = scmp.le.s32.totalorder 1, %s9
    %p137 = scmp.lt.s32.totalorder %s9, 3
    %p138 = pnand %p136, %p137
    %p139 = pneg %p138
    // Predicated region
    $region29: #{inception_block_v2.1} parent=5 // pred_check
      _
    $region30: #{inception_block_v2.1} parent=5 // pred_check_branch
      %141 = sbr.rel (%p138) target = $region32
    $region31: #{inception_block_v2.1} parent=5 // pred_region
      %s142 = ssub.s32 %s9, 1
      %p143 = scmp.lt.s32.totalorder %s14, 1
      %s144 = scalar_select %p143, %s14, 1
      %s145 = smul.addr %s144, 5
      %s146 = smul.addr %s145, 2
      %s147 = scalar_lea.vmem %s0, %s146
      %p148 = pneg %p35
      %p149 = pneg %p32
      %p150 = pneg %p56
      %p151 = pneg %p53
      %p152 = pneg %p77
      %p153 = pneg %p74
      %p154 = pneg %p103
      %p155 = pneg %p100
      %p156 = scmp.lt.s32.totalorder %s14, 1
      %s157 = scalar_select %p156, %s14, 1
      %s158 = smul.addr %s157, 3
      %s159 = smul.addr %s158, 4
      %s160 = scalar_lea.vmem %s3, %s159
      %p161 = scmp.lt.s32.totalorder %s14, 1
      %s162 = scalar_select %p161, %s14, 1
      %s163 = smul.addr %s162, 5
      %s164 = smul.addr %s163, 2
      %s165 = scalar_lea.vmem %s0, %s164
      %p166 = scmp.lt.s32.totalorder %s14, 1
      %s167 = scalar_select %p166, %s14, 1
      %s168 = smul.addr %s167, 3
      %s169 = smul.addr %s168, 4
      %s170 = scalar_lea.vmem %s3, %s169
      %172 = vst [vmem:[#allocation2] sm:$0xcc] 0
      %173 = vst [vmem:[#allocation2 + $0x8] sm:$0xc] 0
      %174 = vst [vmem:[#allocation2 + $0xc] sm:$0xcc] 0
      %175 = vst [vmem:[#allocation2 + $0x14] sm:$0xc] 0
      %176 = vst [vmem:[#allocation2 + $0x18] sm:$0xcc] 0
      %177 = vst [vmem:[#allocation2 + $0x20] sm:$0xc] 0
      %178 = vst [vmem:[#allocation2 + $0x24] sm:$0xcc] 0
      %179 = vst [vmem:[#allocation2 + $0x2c] sm:$0xc] 0
      %180 = vst [vmem:[#allocation2 + $0x30] sm:$0xcc] 0
      %181 = vst [vmem:[#allocation2 + $0x38] sm:$0xc] 0
      %182 = vst [vmem:[#allocation2 + $0x3c] sm:$0xcc] 0
      %183 = vst [vmem:[#allocation2 + $0x44] sm:$0xc] 0
      %184 = vst [vmem:[#allocation2 + $0x48] sm:$0xcc] 0
      %185 = vst [vmem:[#allocation2 + $0x50] sm:$0xc] 0
      %186 = vst [vmem:[#allocation2 + $0x54] sm:$0xcc] 0
      %187 = vst [vmem:[#allocation2 + $0x5c] sm:$0xc] 0
      %188 = vst [vmem:[#allocation2 + $0x60] sm:$0xcc] 0
      %189 = vst [vmem:[#allocation2 + $0x68] sm:$0xc] 0
      %190 = vst [vmem:[#allocation2 + $0x6c] sm:$0xcc] 0
      %191 = vst [vmem:[#allocation2 + $0x74] sm:$0xc] 0
      %192 = vst [vmem:[#allocation2 + $0x78] sm:$0xcc] 0
      %193 = vst [vmem:[#allocation2 + $0x80] sm:$0xc] 0
      %194 = vst [vmem:[#allocation2 + $0x84] sm:$0xcc] 0
      %195 = vst [vmem:[#allocation2 + $0x8c] sm:$0xc] 0
      %196 = vst [vmem:[#allocation2 + $0x90] sm:$0xcc] 0
      %197 = vst [vmem:[#allocation2 + $0x98] sm:$0xc] 0
      %v198 = vld [vmem:[%s2] sm:$0xff]
      %v199 = vld [vmem:[%s165] sm:$0xff]
      %v201 = vcombine.high %v199, %v199
      %v203 = vunpack.c.l.s4 1983009808
      %v204 = vunpack.c.0.s8 %v203
      %v205 = vlaneseq
      %v206 = vshrl.u32 %v205, 7
      %v207 = vsub.s32 %v204, %v206
      %v208 = vrot.slane %v199, %v207
      %v210 = vunpack.c.l.s4 1983009808
      %v211 = vunpack.c.0.s8 %v210
      %v212 = vlaneseq
      %v213 = vshrl.u32 %v212, 7
      %v214 = vsub.s32 %v211, %v213
      %v215 = vrot.slane %v201, %v214
      %216 = vrot.lane.b32.xlu0 %v208, 62
      %v217 = vpop.permute.xlu0 %216
      %218 = vrot.lane.b32.xlu0 %v215, 62
      %v219 = vpop.permute.xlu0 %218
      %v220 = vrot.slane %v217, 4
      %v221 = vrot.slane %v219, 4
      %vm222 = vcmask 1043456
      %v223 = vsel %vm222, %v220, %v221
      %vm224 = vcmask 506880
      %v225 = vsel %vm224, %v217, %v223
      %v226 = vsel %vm224, %v219, %v221
      %229 = vst [vmem:[#allocation2] sm:$0x33] %v225
      %230 = vst [vmem:[#allocation2 + $0x8] sm:$0x3] %v226
      %v231 = vld [vmem:[%s165] sm:$0xff]
      %v233 = vcombine.high %v231, %v231
      %v235 = vunpack.c.l.s4 1983009808
      %v236 = vunpack.c.0.s8 %v235
      %v237 = vlaneseq
      %v238 = vshrl.u32 %v237, 7
      %v239 = vsub.s32 %v236, %v238
      %v240 = vrot.slane %v231, %v239
      %v242 = vunpack.c.l.s4 1983009808
      %v243 = vunpack.c.0.s8 %v242
      %v244 = vlaneseq
      %v245 = vshrl.u32 %v244, 7
      %v246 = vsub.s32 %v243, %v245
      %v247 = vrot.slane %v233, %v246
      %248 = vrot.lane.b32.xlu0 %v240, 61
      %v249 = vpop.permute.xlu0 %248
      %250 = vrot.lane.b32.xlu0 %v247, 61
      %v251 = vpop.permute.xlu0 %250
      %v252 = vrot.slane %v249, 4
      %v253 = vrot.slane %v251, 4
      %v254 = vsel %vm222, %v252, %v253
      %vm255 = vcmask 498688
      %v256 = vsel %vm255, %v249, %v254
      %v257 = vsel %vm255, %v251, %v253
      %260 = vst [vmem:[#allocation2 + $0xc] sm:$0x33] %v256
      %261 = vst [vmem:[#allocation2 + $0x14] sm:$0x3] %v257
      %v262 = vld [vmem:[%s165] sm:$0xff]
      %v264 = vcombine.high %v262, %v262
      %v266 = vunpack.c.l.s4 1983009808
      %v267 = vunpack.c.0.s8 %v266
      %v268 = vlaneseq
      %v269 = vshrl.u32 %v268, 7
      %v270 = vsub.s32 %v267, %v269
      %v271 = vrot.slane %v262, %v270
      %v273 = vunpack.c.l.s4 1983009808
      %v274 = vunpack.c.0.s8 %v273
      %v275 = vlaneseq
      %v276 = vshrl.u32 %v275, 7
      %v277 = vsub.s32 %v274, %v276
      %v278 = vrot.slane %v264, %v277
      %279 = vrot.lane.b32.xlu0 %v271, 60
      %v280 = vpop.permute.xlu0 %279
      %281 = vrot.lane.b32.xlu0 %v278, 60
      %v282 = vpop.permute.xlu0 %281
      %v283 = vrot.slane %v280, 4
      %v284 = vrot.slane %v282, 4
      %v285 = vsel %vm222, %v283, %v284
      %vm286 = vcmask 490496
      %v287 = vsel %vm286, %v280, %v285
      %v288 = vsel %vm286, %v282, %v284
      %291 = vst [vmem:[#allocation2 + $0x18] sm:$0x33] %v287
      %292 = vst [vmem:[#allocation2 + $0x20] sm:$0x3] %v288
      %v293 = vld [vmem:[%s165] sm:$0xff]
      %v295 = vcombine.high %v293, %v293
      %v297 = vunpack.c.l.s4 1983009808
      %v298 = vunpack.c.0.s8 %v297
      %v299 = vlaneseq
      %v300 = vshrl.u32 %v299, 7
      %v301 = vsub.s32 %v298, %v300
      %v302 = vrot.slane %v293, %v301
      %v304 = vunpack.c.l.s4 1983009808
      %v305 = vunpack.c.0.s8 %v304
      %v306 = vlaneseq
      %v307 = vshrl.u32 %v306, 7
      %v308 = vsub.s32 %v305, %v307
      %v309 = vrot.slane %v295, %v308
      %310 = vrot.lane.b32.xlu0 %v302, 58
      %v311 = vpop.permute.xlu0 %310
      %312 = vrot.lane.b32.xlu0 %v309, 58
      %v313 = vpop.permute.xlu0 %312
      %v314 = vrot.slane %v311, 4
      %v315 = vrot.slane %v313, 4
      %v316 = vsel %vm222, %v314, %v315
      %vm317 = vcmask 474112
      %v318 = vsel %vm317, %v311, %v316
      %v319 = vsel %vm317, %v313, %v315
      %322 = vst [vmem:[#allocation2 + $0x24] sm:$0x33] %v318
      %323 = vst [vmem:[#allocation2 + $0x2c] sm:$0x3] %v319
      %v324 = vld [vmem:[%s165] sm:$0xff]
      %v326 = vcombine.high %v324, %v324
      %v328 = vunpack.c.l.s4 1983009808
      %v329 = vunpack.c.0.s8 %v328
      %v330 = vlaneseq
      %v331 = vshrl.u32 %v330, 7
      %v332 = vsub.s32 %v329, %v331
      %v333 = vrot.slane %v324, %v332
      %v335 = vunpack.c.l.s4 1983009808
      %v336 = vunpack.c.0.s8 %v335
      %v337 = vlaneseq
      %v338 = vshrl.u32 %v337, 7
      %v339 = vsub.s32 %v336, %v338
      %v340 = vrot.slane %v326, %v339
      %341 = vrot.lane.b32.xlu0 %v333, 57
      %v342 = vpop.permute.xlu0 %341
      %343 = vrot.lane.b32.xlu0 %v340, 57
      %v344 = vpop.permute.xlu0 %343
      %v345 = vrot.slane %v342, 4
      %v346 = vrot.slane %v344, 4
      %v347 = vsel %vm222, %v345, %v346
      %vm348 = vcmask 465920
      %v349 = vsel %vm348, %v342, %v347
      %v350 = vsel %vm348, %v344, %v346
      %353 = vst [vmem:[#allocation2 + $0x30] sm:$0x33] %v349
      %354 = vst [vmem:[#allocation2 + $0x38] sm:$0x3] %v350
      %v355 = vld [vmem:[%s165] sm:$0xff]
      %v357 = vcombine.high %v355, %v355
      %v359 = vunpack.c.l.s4 1983009808
      %v360 = vunpack.c.0.s8 %v359
      %v361 = vlaneseq
      %v362 = vshrl.u32 %v361, 7
      %v363 = vsub.s32 %v360, %v362
      %v364 = vrot.slane %v355, %v363
      %v366 = vunpack.c.l.s4 1983009808
      %v367 = vunpack.c.0.s8 %v366
      %v368 = vlaneseq
      %v369 = vshrl.u32 %v368, 7
      %v370 = vsub.s32 %v367, %v369
      %v371 = vrot.slane %v357, %v370
      %372 = vrot.lane.b32.xlu0 %v364, 56
      %v373 = vpop.permute.xlu0 %372
      %374 = vrot.lane.b32.xlu0 %v371, 56
      %v375 = vpop.permute.xlu0 %374
      %v376 = vrot.slane %v373, 4
      %v377 = vrot.slane %v375, 4
      %v378 = vsel %vm222, %v376, %v377
      %vm379 = vcmask 457728
      %v380 = vsel %vm379, %v373, %v378
      %v381 = vsel %vm379, %v375, %v377
      %384 = vst [vmem:[#allocation2 + $0x3c] sm:$0x33] %v380
      %385 = vst [vmem:[#allocation2 + $0x44] sm:$0x3] %v381
      %v386 = vld [vmem:[%s165] sm:$0xff]
      %v388 = vcombine.high %v386, %v386
      %v390 = vunpack.c.l.s4 1983009808
      %v391 = vunpack.c.0.s8 %v390
      %v392 = vlaneseq
      %v393 = vshrl.u32 %v392, 7
      %v394 = vsub.s32 %v391, %v393
      %v395 = vrot.slane %v386, %v394
      %v397 = vunpack.c.l.s4 1983009808
      %v398 = vunpack.c.0.s8 %v397
      %v399 = vlaneseq
      %v400 = vshrl.u32 %v399, 7
      %v401 = vsub.s32 %v398, %v400
      %v402 = vrot.slane %v388, %v401
      %403 = vrot.lane.b32.xlu0 %v395, 125
      %v404 = vpop.permute.xlu0 %403
      %405 = vrot.lane.b32.xlu0 %v402, 125
      %v406 = vpop.permute.xlu0 %405
      %v407 = vrot.slane %v404, 4
      %v408 = vrot.slane %v406, 4
      %v409 = vsel %vm222, %v407, %v408
      %vm410 = vcmask 1022976
      %v411 = vsel %vm410, %v404, %v409
      %v412 = vsel %vm410, %v406, %v408
      %415 = vst [vmem:[#allocation2 + $0x48] sm:$0x33] %v411
      %416 = vst [vmem:[#allocation2 + $0x50] sm:$0x3] %v412
      %v417 = vld [vmem:[%s165] sm:$0xff]
      %v419 = vcombine.high %v417, %v417
      %v421 = vunpack.c.l.s4 1983009808
      %v422 = vunpack.c.0.s8 %v421
      %v423 = vlaneseq
      %v424 = vshrl.u32 %v423, 7
      %v425 = vsub.s32 %v422, %v424
      %v426 = vrot.slane %v417, %v425
      %v428 = vunpack.c.l.s4 1983009808
      %v429 = vunpack.c.0.s8 %v428
      %v430 = vlaneseq
      %v431 = vshrl.u32 %v430, 7
      %v432 = vsub.s32 %v429, %v431
      %v433 = vrot.slane %v419, %v432
      %434 = vrot.lane.b32.xlu0 %v426, 103
      %v435 = vpop.permute.xlu0 %434
      %436 = vrot.lane.b32.xlu0 %v433, 103
      %v437 = vpop.permute.xlu0 %436
      %v438 = vrot.slane %v435, 4
      %v439 = vrot.slane %v437, 4
      %v440 = vsel %vm222, %v438, %v439
      %vm441 = vcmask 842752
      %v442 = vsel %vm441, %v435, %v440
      %v443 = vsel %vm441, %v437, %v439
      %446 = vst [vmem:[#allocation2 + $0x54] sm:$0x33] %v442
      %447 = vst [vmem:[#allocation2 + $0x5c] sm:$0x3] %v443
      %v448 = vld [vmem:[%s165] sm:$0xff]
      %v450 = vcombine.high %v448, %v448
      %v452 = vunpack.c.l.s4 1983009808
      %v453 = vunpack.c.0.s8 %v452
      %v454 = vlaneseq
      %v455 = vshrl.u32 %v454, 7
      %v456 = vsub.s32 %v453, %v455
      %v457 = vrot.slane %v448, %v456
      %v459 = vunpack.c.l.s4 1983009808
      %v460 = vunpack.c.0.s8 %v459
      %v461 = vlaneseq
      %v462 = vshrl.u32 %v461, 7
      %v463 = vsub.s32 %v460, %v462
      %v464 = vrot.slane %v450, %v463
      %465 = vrot.lane.b32.xlu0 %v457, 81
      %v466 = vpop.permute.xlu0 %465
      %467 = vrot.lane.b32.xlu0 %v464, 81
      %v468 = vpop.permute.xlu0 %467
      %v469 = vrot.slane %v466, 4
      %v470 = vrot.slane %v468, 4
      %v471 = vsel %vm222, %v469, %v470
      %vm472 = vcmask 662528
      %v473 = vsel %vm472, %v466, %v471
      %v474 = vsel %vm472, %v468, %v470
      %477 = vst [vmem:[#allocation2 + $0x60] sm:$0x33] %v473
      %478 = vst [vmem:[#allocation2 + $0x68] sm:$0x3] %v474
      %v479 = vld [vmem:[%s165] sm:$0xff]
      %v481 = vcombine.high %v479, %v479
      %v483 = vunpack.c.l.s4 1983009808
      %v484 = vunpack.c.0.s8 %v483
      %v485 = vlaneseq
      %v486 = vshrl.u32 %v485, 7
      %v487 = vsub.s32 %v484, %v486
      %v488 = vrot.slane %v479, %v487
      %v490 = vunpack.c.l.s4 1983009808
      %v491 = vunpack.c.0.s8 %v490
      %v492 = vlaneseq
      %v493 = vshrl.u32 %v492, 7
      %v494 = vsub.s32 %v491, %v493
      %v495 = vrot.slane %v481, %v494
      %496 = vrot.lane.b32.xlu0 %v488, 37
      %v497 = vpop.permute.xlu0 %496
      %498 = vrot.lane.b32.xlu0 %v495, 37
      %v499 = vpop.permute.xlu0 %498
      %v500 = vrot.slane %v497, 4
      %v501 = vrot.slane %v499, 4
      %v502 = vsel %vm222, %v500, %v501
      %vm503 = vcmask 302080
      %v504 = vsel %vm503, %v497, %v502
      %v505 = vsel %vm503, %v499, %v501
      %508 = vst [vmem:[#allocation2 + $0x6c] sm:$0x33] %v504
      %509 = vst [vmem:[#allocation2 + $0x74] sm:$0x3] %v505
      %v510 = vld [vmem:[%s165] sm:$0xff]
      %v512 = vcombine.high %v510, %v510
      %v514 = vunpack.c.l.s4 1983009808
      %v515 = vunpack.c.0.s8 %v514
      %v516 = vlaneseq
      %v517 = vshrl.u32 %v516, 7
      %v518 = vsub.s32 %v515, %v517
      %v519 = vrot.slane %v510, %v518
      %v521 = vunpack.c.l.s4 1983009808
      %v522 = vunpack.c.0.s8 %v521
      %v523 = vlaneseq
      %v524 = vshrl.u32 %v523, 7
      %v525 = vsub.s32 %v522, %v524
      %v526 = vrot.slane %v512, %v525
      %527 = vrot.lane.b32.xlu0 %v519, 15
      %v528 = vpop.permute.xlu0 %527
      %529 = vrot.lane.b32.xlu0 %v526, 15
      %v530 = vpop.permute.xlu0 %529
      %v531 = vrot.slane %v528, 4
      %v532 = vrot.slane %v530, 4
      %v533 = vsel %vm222, %v531, %v532
      %vm534 = vcmask 121856
      %v535 = vsel %vm534, %v528, %v533
      %v536 = vsel %vm534, %v530, %v532
      %539 = vst [vmem:[#allocation2 + $0x78] sm:$0x33] %v535
      %540 = vst [vmem:[#allocation2 + $0x80] sm:$0x3] %v536
      %v541 = vld [vmem:[%s165 + $0x2] sm:$0xff]
      %v543 = vcombine.high %v541, %v541
      %v545 = vunpack.c.l.s4 1983009808
      %v546 = vunpack.c.0.s8 %v545
      %v547 = vlaneseq
      %v548 = vshrl.u32 %v547, 7
      %v549 = vsub.s32 %v546, %v548
      %v550 = vrot.slane %v541, %v549
      %v552 = vunpack.c.l.s4 1983009808
      %v553 = vunpack.c.0.s8 %v552
      %v554 = vlaneseq
      %v555 = vshrl.u32 %v554, 7
      %v556 = vsub.s32 %v553, %v555
      %v557 = vrot.slane %v543, %v556
      %558 = vrot.lane.b32.xlu0 %v550, 121
      %v559 = vpop.permute.xlu0 %558
      %560 = vrot.lane.b32.xlu0 %v557, 121
      %v561 = vpop.permute.xlu0 %560
      %v562 = vrot.slane %v559, 4
      %v563 = vrot.slane %v561, 4
      %v564 = vsel %vm222, %v562, %v563
      %vm565 = vcmask 990208
      %v566 = vsel %vm565, %v559, %v564
      %v567 = vsel %vm565, %v561, %v563
      %570 = vst [vmem:[#allocation2 + $0x84] sm:$0x33] %v566
      %571 = vst [vmem:[#allocation2 + $0x8c] sm:$0x3] %v567
      %v572 = vld [vmem:[%s165] sm:$0xff]
      %v574 = vcombine.high %v572, %v572
      %v576 = vunpack.c.l.s4 1983009808
      %v577 = vunpack.c.0.s8 %v576
      %v578 = vlaneseq
      %v579 = vshrl.u32 %v578, 7
      %v580 = vsub.s32 %v577, %v579
      %v581 = vrot.slane %v572, %v580
      %v583 = vunpack.c.l.s4 1983009808
      %v584 = vunpack.c.0.s8 %v583
      %v585 = vlaneseq
      %v586 = vshrl.u32 %v585, 7
      %v587 = vsub.s32 %v584, %v586
      %v588 = vrot.slane %v574, %v587
      %589 = vrot.lane.b32.xlu0 %v581, 59
      %v590 = vpop.permute.xlu0 %589
      %591 = vrot.lane.b32.xlu0 %v588, 59
      %v592 = vpop.permute.xlu0 %591
      %v593 = vrot.slane %v590, 4
      %v594 = vrot.slane %v592, 4
      %v595 = vsel %vm222, %v593, %v594
      %vm596 = vcmask 482304
      %v597 = vsel %vm596, %v590, %v595
      %v598 = vsel %vm596, %v592, %v594
      %601 = vst [vmem:[#allocation2 + $0x90] sm:$0x33] %v597
      %602 = vst [vmem:[#allocation2 + $0x98] sm:$0x3] %v598
      %v603 = vld [vmem:[%s1] sm:$0xf]
      %v604 = vld [vmem:[#allocation2] sm:$0xff]
      %v605 = vld [vmem:[#allocation2 + $0x8] sm:$0xf]
      %v606 = vld [vmem:[#allocation2 + $0xc] sm:$0xff]
      %v607 = vld [vmem:[#allocation2 + $0x14] sm:$0xf]
      %v608 = vld [vmem:[#allocation2 + $0x18] sm:$0xff]
      %v609 = vld [vmem:[#allocation2 + $0x20] sm:$0xf]
      %v610 = vld [vmem:[#allocation2 + $0x24] sm:$0xff]
      %v611 = vld [vmem:[#allocation2 + $0x2c] sm:$0xf]
      %v612 = vld [vmem:[#allocation2 + $0x30] sm:$0xff]
      %v613 = vld [vmem:[#allocation2 + $0x38] sm:$0xf]
      %v614 = vld [vmem:[#allocation2 + $0x3c] sm:$0xff]
      %v615 = vld [vmem:[#allocation2 + $0x44] sm:$0xf]
      %v616 = vld [vmem:[#allocation2 + $0x48] sm:$0xff]
      %v617 = vld [vmem:[#allocation2 + $0x50] sm:$0xf]
      %v618 = vld [vmem:[#allocation2 + $0x54] sm:$0xff]
      %v619 = vld [vmem:[#allocation2 + $0x5c] sm:$0xf]
      %v620 = vld [vmem:[#allocation2 + $0x60] sm:$0xff]
      %v621 = vld [vmem:[#allocation2 + $0x68] sm:$0xf]
      %v622 = vld [vmem:[#allocation2 + $0x6c] sm:$0xff]
      %v623 = vld [vmem:[#allocation2 + $0x74] sm:$0xf]
      %v624 = vld [vmem:[#allocation2 + $0x78] sm:$0xff]
      %v625 = vld [vmem:[#allocation2 + $0x80] sm:$0xf]
      %v626 = vld [vmem:[#allocation2 + $0x84] sm:$0xff]
      %v627 = vld [vmem:[#allocation2 + $0x8c] sm:$0xf]
      %v628 = vld [vmem:[#allocation2 + $0x90] sm:$0xff]
      %v629 = vld [vmem:[#allocation2 + $0x98] sm:$0xf]
      %631 = vset.pattern.permute.xlu0 0
      %632 = vperm.xlu0 %631, %v198
      %v633 = vpop.permute.xlu0 %632
      %v661 = vunpack.c.l.b16 %v604
      %v662 = vunpack.c.h.b16 %v604
      %v663 = vunpack.c.l.b16 %v605
      %v664 = vunpack.c.l.b16 %v606
      %v665 = vunpack.c.h.b16 %v606
      %v666 = vunpack.c.l.b16 %v607
      %v667 = vunpack.c.l.b16 %v608
      %v668 = vunpack.c.h.b16 %v608
      %v669 = vunpack.c.l.b16 %v609
      %v670 = vunpack.c.l.b16 %v610
      %v671 = vunpack.c.h.b16 %v610
      %v672 = vunpack.c.l.b16 %v611
      %v673 = vunpack.c.l.b16 %v612
      %v674 = vunpack.c.h.b16 %v612
      %v675 = vunpack.c.l.b16 %v613
      %v676 = vunpack.c.l.b16 %v614
      %v677 = vunpack.c.h.b16 %v614
      %v678 = vunpack.c.l.b16 %v615
      %v679 = vunpack.c.l.b16 %v616
      %v680 = vunpack.c.h.b16 %v616
      %v681 = vunpack.c.l.b16 %v617
      %v682 = vunpack.c.l.b16 %v618
      %v683 = vunpack.c.h.b16 %v618
      %v684 = vunpack.c.l.b16 %v619
      %v685 = vunpack.c.l.b16 %v620
      %v686 = vunpack.c.h.b16 %v620
      %v687 = vunpack.c.l.b16 %v621
      %v688 = vunpack.c.l.b16 %v622
      %v689 = vunpack.c.h.b16 %v622
      %v690 = vunpack.c.l.b16 %v623
      %v691 = vunpack.c.l.b16 %v624
      %v692 = vunpack.c.h.b16 %v624
      %v693 = vunpack.c.l.b16 %v625
      %v694 = vunpack.c.l.b16 %v626
      %v695 = vunpack.c.h.b16 %v626
      %v696 = vunpack.c.l.b16 %v627
      %v697 = vunpack.c.l.b16 %v628
      %v698 = vunpack.c.h.b16 %v628
      %v699 = vunpack.c.l.b16 %v629
      %v700 = vpack.c.b16 %v664, %v661
      %v701 = vpack.c.b16 %v665, %v662
      %v702 = vpack.c.b16 %v666, %v663
      %v703 = vpack.c.b16 %v670, %v667
      %v704 = vpack.c.b16 %v671, %v668
      %v705 = vpack.c.b16 %v672, %v669
      %v706 = vpack.c.b16 %v676, %v673
      %v707 = vpack.c.b16 %v677, %v674
      %v708 = vpack.c.b16 %v678, %v675
      %v709 = vpack.c.b16 %v682, %v679
      %v710 = vpack.c.b16 %v683, %v680
      %v711 = vpack.c.b16 %v684, %v681
      %v712 = vpack.c.b16 %v688, %v685
      %v713 = vpack.c.b16 %v689, %v686
      %v714 = vpack.c.b16 %v690, %v687
      %v715 = vpack.c.b16 %v694, %v691
      %v716 = vpack.c.b16 %v695, %v692
      %v717 = vpack.c.b16 %v696, %v693
      %v718 = vpack.c.b16 %v697, %v697
      %v719 = vpack.c.b16 %v698, %v698
      %v720 = vpack.c.b16 %v699, %v699
      %vm739 = vcmask 850944
      %v741 = vsel %vm739, %v603, 0
      %vm743 = vcmask 1043456
      %v745 = vsel %vm743, %v718, 0
      %v748 = vsel %vm743, %v719, 0
      %v751 = vsel %vm743, %v720, 0
      %753 = vmatprep.subr.bf16.mxu0 %v701
      %754 = vmatpush1.bf16.msra.mxu0 %v700
      %755 = vmatprep.subr.bf16.mxu0 %v704
      %756 = vmatpush1.bf16.msra.mxu0 %v703
      %757 = vmatprep.subr.bf16.mxu0 %v707
      %758 = vmatpush1.bf16.msra.mxu0 %v706
      %759 = vmatprep.subr.bf16.mxu0 %v710
      %760 = vmatpush1.bf16.msra.mxu0 %v709
      %761 = vmatprep.subr.bf16.mxu0 %v713
      %762 = vmatpush1.bf16.msra.mxu0 %v712
      %763 = vmatprep.subr.bf16.mxu0 %v716
      %764 = vmatpush1.bf16.msra.mxu0 %v715
      %765 = vmatprep.subr.bf16.mxu0 %v748
      %766 = vmatpush1.bf16.msra.mxu0 %v745
      %767 = vmatprep.subr.bf16.mxu0 0
      %768 = vmatpush1.bf16.msra.mxu0 0
      %769 = vmatprep.subr.bf16.mxu0 0
      %770 = vmatpush1.bf16.msra.mxu0 0
      %771 = vmatprep.subr.bf16.mxu0 0
      %772 = vmatpush1.bf16.msra.mxu0 0
      %773 = vmatprep.subr.bf16.mxu0 0
      %774 = vmatpush1.bf16.msra.mxu0 0
      %775 = vmatprep.subr.bf16.mxu0 0
      %776 = vmatpush1.bf16.msra.mxu0 0
      %777 = vmatprep.subr.bf16.mxu0 0
      %778 = vmatpush1.bf16.msra.mxu0 0
      %779 = vmatprep.subr.bf16.mxu0 0
      %780 = vmatpush1.bf16.msra.mxu0 0
      %781 = vmatprep.subr.bf16.mxu0 0
      %782 = vmatpush1.bf16.msra.mxu0 0
      %783 = vmatprep.subr.bf16.mxu0 0
      %784 = vmatpush1.bf16.msra.mxu0 0
      %785 = vmatprep.mubr.bf16.mxu0 0
      %786 = vmatmul.mubr.bf16.gmra.mrb[0].mxu0 %v741
      %v787 = vpop.f32.mrb[0].mxu0
      %v788 = vadd.f32 %v633, %v787
      %v789 = vpop.f32.mrb[0].mxu0
      %v790 = vadd.f32 %v633, %v789
      %v791 = vpop.f32.mrb[0].mxu0
      %v792 = vpop.f32.mrb[0].mxu0
      %793 = vdwg.mxu0
      %794 = vmatprep.subr.bf16.mxu0 0
      %795 = vmatpush1.bf16.msra.mxu0 %v702
      %796 = vmatprep.subr.bf16.mxu0 0
      %797 = vmatpush1.bf16.msra.mxu0 %v705
      %798 = vmatprep.subr.bf16.mxu0 0
      %799 = vmatpush1.bf16.msra.mxu0 %v708
      %800 = vmatprep.subr.bf16.mxu0 0
      %801 = vmatpush1.bf16.msra.mxu0 %v711
      %802 = vmatprep.subr.bf16.mxu0 0
      %803 = vmatpush1.bf16.msra.mxu0 %v714
      %804 = vmatprep.subr.bf16.mxu0 0
      %805 = vmatpush1.bf16.msra.mxu0 %v717
      %806 = vmatprep.subr.bf16.mxu0 0
      %807 = vmatpush1.bf16.msra.mxu0 %v751
      %808 = vmatprep.subr.bf16.mxu0 0
      %809 = vmatpush1.bf16.msra.mxu0 0
      %810 = vmatprep.subr.bf16.mxu0 0
      %811 = vmatpush1.bf16.msra.mxu0 0
      %812 = vmatprep.subr.bf16.mxu0 0
      %813 = vmatpush1.bf16.msra.mxu0 0
      %814 = vmatprep.subr.bf16.mxu0 0
      %815 = vmatpush1.bf16.msra.mxu0 0
      %816 = vmatprep.subr.bf16.mxu0 0
      %817 = vmatpush1.bf16.msra.mxu0 0
      %818 = vmatprep.subr.bf16.mxu0 0
      %819 = vmatpush1.bf16.msra.mxu0 0
      %820 = vmatprep.subr.bf16.mxu0 0
      %821 = vmatpush1.bf16.msra.mxu0 0
      %822 = vmatprep.subr.bf16.mxu0 0
      %823 = vmatpush1.bf16.msra.mxu0 0
      %824 = vmatprep.subr.bf16.mxu0 0
      %825 = vmatpush1.bf16.msra.mxu0 0
      %826 = vmatprep.mubr.bf16.mxu0 0
      %827 = vmatmul.mubr.bf16.gmra.mrb[0].mxu0 %v741
      %v828 = vpop.f32.mrb[0].mxu0
      %v829 = vadd.f32 %v633, %v828
      %v830 = vpop.f32.mrb[0].mxu0
      %v831 = vpop.f32.mrb[0].mxu0
      %v832 = vpop.f32.mrb[0].mxu0
      %833 = vdwg.mxu0
      %v834 = vpack.c.bf16 %v788, %v788
      %v835 = vpack.c.bf16 %v790, %v790
      %v836 = vpack.c.bf16 %v829, %v829
      %v840 = vunpack.c.l.b16 %v834
      %v841 = vunpack.c.l.b16 %v835
      %v842 = vunpack.c.l.b16 %v836
      %v843 = vpack.c.b16 %v841, %v840
      %v844 = vpack.c.b16 %v842, %v842
      %847 = vst [vmem:[%s170] sm:$0xff] %v843
      %848 = vst [vmem:[%s170 + $0x8] sm:$0xf] %v844
      %p849 = scmp.lt.s32.totalorder %s14, 1
      %s850 = scalar_select %p849, %s14, 1
      %s851 = smul.addr %s850, 3
      %s852 = smul.addr %s851, 4
      %s853 = scalar_lea.vmem %s3, %s852
      // Predicated region
      $region33: #{inception_block_v2.1} parent=31 // pred_check
        %p854 = pneg %p100
      $region34: #{inception_block_v2.1} parent=31 // pred_check_branch
        %856 = sbr.rel (%p854) target = $region36
      $region35: #{inception_block_v2.1} parent=31 // pred_region
        _
      $region36: #{inception_block_v2.1} parent=31 // pred_fallthru
        _
    $region32: #{inception_block_v2.1} parent=5 // pred_fallthru
      _
    %p857 = scmp.le.s32.totalorder 2, %s9
    // Predicated region
    $region37: #{inception_block_v2.1} parent=5 // pred_check
      %p858 = pneg %p857
    $region38: #{inception_block_v2.1} parent=5 // pred_check_branch
      %860 = sbr.rel (%p858) target = $region40
    $region39: #{inception_block_v2.1} parent=5 // pred_region
      %s861 = ssub.s32 %s9, 2
      // Predicated region
      $region41: #{inception_block_v2.1} parent=39 // pred_check
        %p862 = pneg %p106
      $region42: #{inception_block_v2.1} parent=39 // pred_check_branch
        %864 = sbr.rel (%p862) target = $region44
      $region43: #{inception_block_v2.1} parent=39 // pred_region
        %p865 = scmp.lt.s32.totalorder %s15, 1
        %s866 = scalar_select %p865, %s15, 1
        %s867 = smul.addr %s866, 3
        %s868 = smul.addr %s867, 4
        %s869 = scalar_lea.vmem %s3, %s868
      $region44: #{inception_block_v2.1} parent=39 // pred_fallthru
        _
    $region40: #{inception_block_v2.1} parent=5 // pred_fallthru
      _
  $region6: #{inception_block_v2.1} parent=0 // loop_footer
    %s13 = sadd.s32 1, %s9
  $region7: #{inception_block_v2.1} parent=0 // loop_footer_branch
    %8 = sbr.rel target = $region3
  $region8: #{inception_block_v2.1} parent=0 // loop_exit
    _

</llo_original>
